<compile_context>
chip_gen: v7x
topology: tpu7x:2x2x1
jax: 0.10.0
libtpu: 0.0.40
codegen_flags: <defaults>
</compile_context>

<pallas_src>
import functools

import jax
import jax.numpy as jnp
from jax.experimental import pallas as pl
from jax.experimental.pallas import tpu as pltpu


def _round_up(a, b):
    return (a + b - 1) // b * b


def _focal_loss_kernel(x_ref, t_ref, out_ref, *, num_classes, gamma,
                       ignore_index, alpha):
    """One (batch, pixel-tile) grid step.

    x_ref:   (C, S, 128)  logits tile (pixels split over sublanes x lanes).
    t_ref:   (S, 128)     int8/int32 target tile.
    out_ref: (3, 8, 128)  per-tile partial sums:
             [0] loss sum, [1] loss where target==0, [2] valid-pixel count.
    """
    t = t_ref[...].astype(jnp.int32)              # widen narrow targets once

    # Running max over the class axis: C-1 elementwise maxes on (S,128) slabs.
    m = x_ref[0].astype(jnp.float32)
    for c in range(1, num_classes):
        m = jnp.maximum(m, x_ref[c].astype(jnp.float32))

    # Fused per-class pass: accumulate sum(exp(x-m)), gather the target-class
    # logit and alpha[t] with ONE t==c compare per class.  The (C,S,128)
    # log-softmax temp is never materialized.
    sumexp = jnp.zeros(t.shape, jnp.float32)
    x_t = jnp.zeros(t.shape, jnp.float32)
    at = jnp.zeros(t.shape, jnp.float32) if alpha is not None else None
    mask0 = None
    for c in range(num_classes):
        xc = x_ref[c].astype(jnp.float32)
        sumexp = sumexp + jnp.exp(xc - m)
        mask = t == c
        if c == 0:
            mask0 = mask                          # reused for the target==0 sum
        x_t = jnp.where(mask, xc, x_t)
        if alpha is not None:
            at = jnp.where(mask, jnp.float32(alpha[c]), at)

    # Natural-log softmax gathered at the target class (pre-alpha), (S,128).
    logpt = (x_t - m) - jnp.log(sumexp)

    if gamma != 0:
        # Faithful to the torch source: pt = logpt.exp2() (i.e. 2**logpt),
        # computed from the PRE-alpha logpt.
        pt = jnp.exp2(logpt)
        base = 1.0 - pt
        g = float(gamma)
        if g == int(g) and int(g) >= 1:
            mod = base ** int(g)                  # integer_pow: VPU mults, no EUP
        else:
            mod = base ** jnp.float32(g)
    else:
        mod = None                                # gamma==0 -> modulation == 1

    if alpha is not None:
        logpt = logpt * at

    loss = -logpt if mod is None else -(mod * logpt)

    # torch drops pixels with target == ignore_index; padding pixels were
    # filled with ignore_index in the wrapper so they vanish here too.
    valid = t != ignore_index
    loss = jnp.where(valid, loss, 0.0)

    # Intra-tile fold to one vreg slab per quantity: (S,128)->(S//8,8,128)
    # sum(axis=0).  The reshape matches vreg boundaries -> pure vreg adds,
    # a single (8,128) store each (v5e vst-slot friendly, tiny HBM writeback).
    S = loss.shape[0]

    def _fold(v):
        return jnp.sum(v.reshape(S // 8, 8, 128), axis=0)

    out_ref[0] = _fold(loss)
    out_ref[1] = _fold(jnp.where(mask0, loss, 0.0))
    out_ref[2] = _fold(valid.astype(jnp.float32))


def focal_loss(x, target, gamma=0, alpha=None, size_average=False,
               ignore_index=2, weight=(0.5, 0.5), pixels_per_tile=None,
               max_tile_bytes=4 * 1024 * 1024):
    """JAX/Pallas equivalent of FocalLoss(...)(x, target).

    x:      (N, C, H, W) logits (NCHW, like PyTorch); any float dtype.
    target: (N, H, W)    int class indices in [0, C) or == ignore_index.
    """
    N, C, H, W = x.shape
    HW = H * W
    itemsize = jnp.dtype(x.dtype).itemsize

    # Narrow the target stream to int8 when class ids / ignore_index fit.
    use_i8 = (C <= 127) and (-128 <= ignore_index <= 127)
    t_dtype = jnp.int8 if use_i8 else jnp.int32
    t_item = jnp.dtype(t_dtype).itemsize

    # Pixel granule keeping every tile sublane-native for all streams:
    # f32 x -> S%8 (1024 px), 16-bit x -> S%16 (2048 px), int8 t -> S%32 (4096 px).
    granule = max(2048 if itemsize == 2 else 1024, 4096 if use_i8 else 1024)

    # Byte-based tile sizing: ~max_tile_bytes per x tile (double-buffered by
    # the pipeline).  Also cap pixel count so f32 elementwise temps stay small
    # (v7x 64 MiB VMEM headroom).
    bytes_cap = max_tile_bytes // (C * itemsize)
    cap = max(granule, min(bytes_cap, 512 * 1024) // granule * granule)
    if pixels_per_tile is None:
        pixels_per_tile = cap
    else:
        pixels_per_tile = min(_round_up(pixels_per_tile, granule), cap)

    if HW <= pixels_per_tile:
        tile = _round_up(HW, granule)             # single tile
    else:
        tile = pixels_per_tile
    hw_pad = _round_up(HW, tile)
    n_tiles = hw_pad // tile
    S = tile // 128

    # Free reshapes of the contiguous NCHW tensor; pad tail pixels (if any)
    # with ignore_index so the kernel masks them out.
    x3 = x.reshape(N, C, HW)
    t2 = target.reshape(N, HW).astype(t_dtype)
    if hw_pad != HW:
        pad = hw_pad - HW
        x3 = jnp.pad(x3, ((0, 0), (0, 0), (0, pad)))
        t2 = jnp.pad(t2, ((0, 0), (0, pad)), constant_values=ignore_index)
    x4 = x3.reshape(N, C, hw_pad // 128, 128)
    t3 = t2.reshape(N, hw_pad // 128, 128)

    kernel = functools.partial(
        _focal_loss_kernel,
        num_classes=C,
        gamma=gamma,
        ignore_index=ignore_index,
        alpha=None if alpha is None else tuple(float(a) for a in alpha),
    )

    cost = pl.CostEstimate(
        flops=int(N * hw_pad * (8 * C + 16)),
        transcendentals=int(N * hw_pad * (C + 1 + (3 if gamma != 0 else 0))),
        bytes_accessed=int(N * C * hw_pad * itemsize + N * hw_pad * t_item
                           + N * n_tiles * 3 * 8 * 128 * 4),
    )

    partials = pl.pallas_call(
        kernel,
        out_shape=jax.ShapeDtypeStruct((N, n_tiles, 3, 8, 128), jnp.float32),
        grid_spec=pltpu.PrefetchScalarGridSpec(
            num_scalar_prefetch=0,
            grid=(N, n_tiles),
            in_specs=[
                pl.BlockSpec((None, C, S, 128), lambda n, j: (n, 0, j, 0)),
                pl.BlockSpec((None, S, 128), lambda n, j: (n, j, 0)),
            ],
            out_specs=pl.BlockSpec((None, None, 3, 8, 128),
                                   lambda n, j: (n, j, 0, 0, 0)),
        ),
        compiler_params=pltpu.CompilerParams(
            dimension_semantics=("parallel", "parallel"),
            vmem_limit_bytes=48 * 1024 * 1024,
        ),
        cost_estimate=cost,
    )(x4, t3)

    # Tiny final reduction outside the kernel (a few KiB of HBM traffic).
    sums = jnp.sum(partials, axis=(0, 1, 3, 4))   # (3,)
    loss_sum, bal_sum, n_valid = sums[0], sums[1], sums[2]

    if size_average:
        w0, w1 = weight
        # torch would compute 0/0 = NaN if every pixel is ignored; guarded here
        # (documented deviation for parity tests).
        return ((w0 - w1) * bal_sum + w1 * loss_sum) / jnp.maximum(n_valid, 1.0)
    return loss_sum


def _focal_loss_ref(x, target, gamma=0, alpha=None, size_average=False,
                    ignore_index=2, weight=(0.5, 0.5)):
    """Pure-JAX reference mirroring the torch code (for correctness check)."""
    N, C, H, W = x.shape
    xr = jnp.transpose(x.reshape(N, C, H * W), (0, 2, 1)).reshape(-1, C)
    t = target.reshape(-1)
    keep = t != ignore_index
    xr = xr[keep]
    t = t[keep]
    logsm = jax.nn.log_softmax(xr.astype(jnp.float32), axis=1)
    logpt = jnp.take_along_axis(logsm, t[:, None], axis=1)[:, 0]
    pt = jnp.exp2(logpt)   # faithful to the torch source's .exp2()
    if alpha is not None:
        logpt = logpt * jnp.asarray(alpha, jnp.float32)[t]
    loss = -((1.0 - pt) ** gamma) * logpt
    if size_average:
        bal = jnp.sum(jnp.where(t == 0, loss, 0.0))
        return ((weight[0] - weight[1]) * bal
                + weight[1] * jnp.sum(loss)) / loss.shape[0]
    return jnp.sum(loss)


if __name__ == "__main__":
    key = jax.random.PRNGKey(0)
    k1, k2 = jax.random.split(key)

    N, C, H, W = 2, 4, 16, 16
    x = jax.random.normal(k1, (N, C, H, W), dtype=jnp.float32)
    # class labels 0..C-1; label 2 is naturally present and gets ignored
    target = jax.random.randint(k2, (N, H, W), 0, C, dtype=jnp.int32)

    # Default module config: gamma=0, alpha=None, sum reduction.
    out = jax.block_until_ready(focal_loss(x, target))
    ref = _focal_loss_ref(x, target)
    assert abs(float(out) - float(ref)) <= 1e-3 * max(1.0, abs(float(ref))), (
        float(out), float(ref))

    # Also exercise gamma / alpha / size_average paths.
    cfg = dict(gamma=2, alpha=(0.25, 0.75, 1.0, 0.5), size_average=True)
    out2 = jax.block_until_ready(focal_loss(x, target, **cfg))
    ref2 = _focal_loss_ref(x, target, **cfg)
    assert abs(float(out2) - float(ref2)) <= 1e-3 * max(1.0, abs(float(ref2))), (
        float(out2), float(ref2))

    print("KERNEL_OK")
</pallas_src>

<mosaic_0001>
module attributes {stable_mosaic.version = 11 : i64} {
  func.func @_focal_loss_kernel(%arg0: i32, %arg1: i32, %arg2: memref<1x4x32x128xf32, #tpu.memory_space<vmem>>, %arg3: memref<1x32x128xi8, #tpu.memory_space<vmem>>, %arg4: memref<1x1x3x8x128xf32, #tpu.memory_space<vmem>>) attributes {dimension_semantics = [#tpu.dimension_semantics<parallel>, #tpu.dimension_semantics<parallel>], iteration_bounds = array<i64: 2, 1>, scalar_prefetch = 0 : i64, scratch_operands = 0 : i64, tpu.core_type = #tpu.core_type<tc>, window_params = [{transform_indices = @transform_0, window_bounds = array<i64: 1, 4, 32, 128>}, {transform_indices = @transform_1, window_bounds = array<i64: 1, 32, 128>}, {transform_indices = @transform_2, window_bounds = array<i64: 1, 1, 3, 8, 128>}]} {
    %c0 = arith.constant 0 : index
    %c0_0 = arith.constant 0 : index
    %c0_1 = arith.constant 0 : index
    %0 = vector.load %arg3[%c0, %c0_0, %c0_1] : memref<1x32x128xi8, #tpu.memory_space<vmem>>, vector<1x32x128xi8>
    %1 = vector.shape_cast %0 : vector<1x32x128xi8> to vector<32x128xi8>
    %2 = arith.extsi %1 : vector<32x128xi8> to vector<32x128xi32>
    %c0_2 = arith.constant 0 : index
    %c0_3 = arith.constant 0 : index
    %c0_4 = arith.constant 0 : index
    %c0_5 = arith.constant 0 : index
    %3 = vector.load %arg2[%c0_2, %c0_3, %c0_4, %c0_5] : memref<1x4x32x128xf32, #tpu.memory_space<vmem>>, vector<1x1x32x128xf32>
    %4 = vector.shape_cast %3 : vector<1x1x32x128xf32> to vector<32x128xf32>
    %c0_6 = arith.constant 0 : index
    %c1 = arith.constant 1 : index
    %c0_7 = arith.constant 0 : index
    %c0_8 = arith.constant 0 : index
    %5 = vector.load %arg2[%c0_6, %c1, %c0_7, %c0_8] : memref<1x4x32x128xf32, #tpu.memory_space<vmem>>, vector<1x1x32x128xf32>
    %6 = vector.shape_cast %5 : vector<1x1x32x128xf32> to vector<32x128xf32>
    %7 = arith.maximumf %4, %6 : vector<32x128xf32>
    %c0_9 = arith.constant 0 : index
    %c2 = arith.constant 2 : index
    %c0_10 = arith.constant 0 : index
    %c0_11 = arith.constant 0 : index
    %8 = vector.load %arg2[%c0_9, %c2, %c0_10, %c0_11] : memref<1x4x32x128xf32, #tpu.memory_space<vmem>>, vector<1x1x32x128xf32>
    %9 = vector.shape_cast %8 : vector<1x1x32x128xf32> to vector<32x128xf32>
    %10 = arith.maximumf %7, %9 : vector<32x128xf32>
    %c0_12 = arith.constant 0 : index
    %c3 = arith.constant 3 : index
    %c0_13 = arith.constant 0 : index
    %c0_14 = arith.constant 0 : index
    %11 = vector.load %arg2[%c0_12, %c3, %c0_13, %c0_14] : memref<1x4x32x128xf32, #tpu.memory_space<vmem>>, vector<1x1x32x128xf32>
    %12 = vector.shape_cast %11 : vector<1x1x32x128xf32> to vector<32x128xf32>
    %13 = arith.maximumf %10, %12 : vector<32x128xf32>
    %cst = arith.constant 0.000000e+00 : f32
    %14 = vector.broadcast %cst : f32 to vector<32x128xf32>
    %cst_15 = arith.constant 0.000000e+00 : f32
    %15 = vector.broadcast %cst_15 : f32 to vector<32x128xf32>
    %c0_16 = arith.constant 0 : index
    %c0_17 = arith.constant 0 : index
    %c0_18 = arith.constant 0 : index
    %c0_19 = arith.constant 0 : index
    %16 = vector.load %arg2[%c0_16, %c0_17, %c0_18, %c0_19] : memref<1x4x32x128xf32, #tpu.memory_space<vmem>>, vector<1x1x32x128xf32>
    %17 = vector.shape_cast %16 : vector<1x1x32x128xf32> to vector<32x128xf32>
    %18 = arith.subf %17, %13 : vector<32x128xf32>
    %19 = math.exp %18 : vector<32x128xf32>
    %20 = arith.addf %14, %19 : vector<32x128xf32>
    %c0_i32 = arith.constant 0 : i32
    %21 = vector.broadcast %c0_i32 : i32 to vector<32x128xi32>
    %22 = arith.cmpi eq, %2, %21 : vector<32x128xi32>
    %23 = arith.select %22, %17, %15 : vector<32x128xi1>, vector<32x128xf32>
    %c0_20 = arith.constant 0 : index
    %c1_21 = arith.constant 1 : index
    %c0_22 = arith.constant 0 : index
    %c0_23 = arith.constant 0 : index
    %24 = vector.load %arg2[%c0_20, %c1_21, %c0_22, %c0_23] : memref<1x4x32x128xf32, #tpu.memory_space<vmem>>, vector<1x1x32x128xf32>
    %25 = vector.shape_cast %24 : vector<1x1x32x128xf32> to vector<32x128xf32>
    %26 = arith.subf %25, %13 : vector<32x128xf32>
    %27 = math.exp %26 : vector<32x128xf32>
    %28 = arith.addf %20, %27 : vector<32x128xf32>
    %c1_i32 = arith.constant 1 : i32
    %29 = vector.broadcast %c1_i32 : i32 to vector<32x128xi32>
    %30 = arith.cmpi eq, %2, %29 : vector<32x128xi32>
    %31 = arith.select %30, %25, %23 : vector<32x128xi1>, vector<32x128xf32>
    %c0_24 = arith.constant 0 : index
    %c2_25 = arith.constant 2 : index
    %c0_26 = arith.constant 0 : index
    %c0_27 = arith.constant 0 : index
    %32 = vector.load %arg2[%c0_24, %c2_25, %c0_26, %c0_27] : memref<1x4x32x128xf32, #tpu.memory_space<vmem>>, vector<1x1x32x128xf32>
    %33 = vector.shape_cast %32 : vector<1x1x32x128xf32> to vector<32x128xf32>
    %34 = arith.subf %33, %13 : vector<32x128xf32>
    %35 = math.exp %34 : vector<32x128xf32>
    %36 = arith.addf %28, %35 : vector<32x128xf32>
    %c2_i32 = arith.constant 2 : i32
    %37 = vector.broadcast %c2_i32 : i32 to vector<32x128xi32>
    %38 = arith.cmpi eq, %2, %37 : vector<32x128xi32>
    %39 = arith.select %38, %33, %31 : vector<32x128xi1>, vector<32x128xf32>
    %c0_28 = arith.constant 0 : index
    %c3_29 = arith.constant 3 : index
    %c0_30 = arith.constant 0 : index
    %c0_31 = arith.constant 0 : index
    %40 = vector.load %arg2[%c0_28, %c3_29, %c0_30, %c0_31] : memref<1x4x32x128xf32, #tpu.memory_space<vmem>>, vector<1x1x32x128xf32>
    %41 = vector.shape_cast %40 : vector<1x1x32x128xf32> to vector<32x128xf32>
    %42 = arith.subf %41, %13 : vector<32x128xf32>
    %43 = math.exp %42 : vector<32x128xf32>
    %44 = arith.addf %36, %43 : vector<32x128xf32>
    %c3_i32 = arith.constant 3 : i32
    %45 = vector.broadcast %c3_i32 : i32 to vector<32x128xi32>
    %46 = arith.cmpi eq, %2, %45 : vector<32x128xi32>
    %47 = arith.select %46, %41, %39 : vector<32x128xi1>, vector<32x128xf32>
    %48 = arith.subf %47, %13 : vector<32x128xf32>
    %49 = math.log %44 : vector<32x128xf32>
    %50 = arith.subf %48, %49 : vector<32x128xf32>
    %cst_32 = arith.constant 0.000000e+00 : f32
    %51 = vector.broadcast %cst_32 : f32 to vector<32x128xf32>
    %52 = arith.subf %51, %50 : vector<32x128xf32>
    %c2_i32_33 = arith.constant 2 : i32
    %53 = vector.broadcast %c2_i32_33 : i32 to vector<32x128xi32>
    %54 = arith.cmpi ne, %2, %53 : vector<32x128xi32>
    %cst_34 = arith.constant 0.000000e+00 : f32
    %55 = vector.broadcast %cst_34 : f32 to vector<32x128xf32>
    %56 = arith.select %54, %52, %55 : vector<32x128xi1>, vector<32x128xf32>
    %57 = vector.shape_cast %56 : vector<32x128xf32> to vector<4x8x128xf32>
    %cst_35 = arith.constant dense<0.000000e+00> : vector<8x128xf32>
    %58 = vector.multi_reduction <add>, %57, %cst_35 [0] : vector<4x8x128xf32> to vector<8x128xf32>
    %c0_36 = arith.constant 0 : index
    %c0_37 = arith.constant 0 : index
    %c0_38 = arith.constant 0 : index
    %c0_39 = arith.constant 0 : index
    %c0_40 = arith.constant 0 : index
    %59 = vector.load %arg4[%c0_36, %c0_37, %c0_38, %c0_39, %c0_40] : memref<1x1x3x8x128xf32, #tpu.memory_space<vmem>>, vector<1x1x1x8x128xf32>
    %60 = vector.shape_cast %59 : vector<1x1x1x8x128xf32> to vector<8x128xf32>
    %61 = vector.shape_cast %58 : vector<8x128xf32> to vector<1x1x1x8x128xf32>
    tpu.vector_store %arg4[%c0_36, %c0_37, %c0_38, %c0_39, %c0_40], %61 {strides = array<i32>} : memref<1x1x3x8x128xf32, #tpu.memory_space<vmem>>, vector<1x1x1x8x128xf32>,
    %cst_41 = arith.constant 0.000000e+00 : f32
    %62 = vector.broadcast %cst_41 : f32 to vector<32x128xf32>
    %63 = arith.select %22, %56, %62 : vector<32x128xi1>, vector<32x128xf32>
    %64 = vector.shape_cast %63 : vector<32x128xf32> to vector<4x8x128xf32>
    %cst_42 = arith.constant dense<0.000000e+00> : vector<8x128xf32>
    %65 = vector.multi_reduction <add>, %64, %cst_42 [0] : vector<4x8x128xf32> to vector<8x128xf32>
    %c0_43 = arith.constant 0 : index
    %c0_44 = arith.constant 0 : index
    %c1_45 = arith.constant 1 : index
    %c0_46 = arith.constant 0 : index
    %c0_47 = arith.constant 0 : index
    %66 = vector.load %arg4[%c0_43, %c0_44, %c1_45, %c0_46, %c0_47] : memref<1x1x3x8x128xf32, #tpu.memory_space<vmem>>, vector<1x1x1x8x128xf32>
    %67 = vector.shape_cast %66 : vector<1x1x1x8x128xf32> to vector<8x128xf32>
    %68 = vector.shape_cast %65 : vector<8x128xf32> to vector<1x1x1x8x128xf32>
    tpu.vector_store %arg4[%c0_43, %c0_44, %c1_45, %c0_46, %c0_47], %68 {strides = array<i32>} : memref<1x1x3x8x128xf32, #tpu.memory_space<vmem>>, vector<1x1x1x8x128xf32>,
    %69 = arith.extui %54 : vector<32x128xi1> to vector<32x128xi32>
    %70 = arith.sitofp %69 : vector<32x128xi32> to vector<32x128xf32>
    %71 = vector.shape_cast %70 : vector<32x128xf32> to vector<4x8x128xf32>
    %cst_48 = arith.constant dense<0.000000e+00> : vector<8x128xf32>
    %72 = vector.multi_reduction <add>, %71, %cst_48 [0] : vector<4x8x128xf32> to vector<8x128xf32>
    %c0_49 = arith.constant 0 : index
    %c0_50 = arith.constant 0 : index
    %c2_51 = arith.constant 2 : index
    %c0_52 = arith.constant 0 : index
    %c0_53 = arith.constant 0 : index
    %73 = vector.load %arg4[%c0_49, %c0_50, %c2_51, %c0_52, %c0_53] : memref<1x1x3x8x128xf32, #tpu.memory_space<vmem>>, vector<1x1x1x8x128xf32>
    %74 = vector.shape_cast %73 : vector<1x1x1x8x128xf32> to vector<8x128xf32>
    %75 = vector.shape_cast %72 : vector<8x128xf32> to vector<1x1x1x8x128xf32>
    tpu.vector_store %arg4[%c0_49, %c0_50, %c2_51, %c0_52, %c0_53], %75 {strides = array<i32>} : memref<1x1x3x8x128xf32, #tpu.memory_space<vmem>>, vector<1x1x1x8x128xf32>,
    return
  }
  func.func @transform_0(%arg0: i32, %arg1: i32) -> (i32, i32, i32, i32) {
    %c0_i32 = arith.constant 0 : i32
    %c0_i32_0 = arith.constant 0 : i32
    %c0_i32_1 = arith.constant 0 : i32
    return %arg0, %c0_i32, %arg1, %c0_i32_0 : i32, i32, i32, i32
  }
  func.func @transform_1(%arg0: i32, %arg1: i32) -> (i32, i32, i32) {
    %c0_i32 = arith.constant 0 : i32
    %c0_i32_0 = arith.constant 0 : i32
    return %arg0, %arg1, %c0_i32 : i32, i32, i32
  }
  func.func @transform_2(%arg0: i32, %arg1: i32) -> (i32, i32, i32, i32, i32) {
    %c0_i32 = arith.constant 0 : i32
    %c0_i32_0 = arith.constant 0 : i32
    %c0_i32_1 = arith.constant 0 : i32
    %c0_i32_2 = arith.constant 0 : i32
    return %arg0, %arg1, %c0_i32, %c0_i32_0, %c0_i32_1 : i32, i32, i32, i32, i32
  }
}

</mosaic_0001>

<llo_original>
// kernel: tpu_custom_call.1
$region0: #{tpu_custom_call.1}
  #allocation0 [shape = 'u32[]', space=smem, size = 0x4, offset = 0x4, fixed_abs, tag = 'smem constant byte address 0x4 - core index']
  #allocation1 [shape = 'u32[144,128]{1,0:T(1,128)}', space=vmem, size = 0x12000, scoped, tag = 'internal scratch']
  %s0 = inlined_call_operand.hbm [shape: f32[2,4,32,128], index: 0, kind: input, shape index: {}]
  %s1 = inlined_call_operand.hbm [shape: s8[2,32,128], index: 1, kind: input, shape index: {}]
  %s2 = inlined_call_operand.hbm [shape: f32[2,1,3,8,128], index: 2, kind: output, shape index: {}]
  %s3 = sld [smem:[#allocation0]]
  $region49: #{tpu_custom_call.1} parent=0
    _
  %s5 = ssub.s32 1, %s3
  %s6 = scalar_select 0, %s5, %s3
  $region1: #{tpu_custom_call.1} parent=0
    #allocation2 [shape = 'u8[131072]{0}', space=vmem, size = 0x20000, scoped, tag = 'input window, operand 0']
    #allocation3 [shape = 's32[2]{0}', space=sflag, size = 0x8, scoped, tag = 'scoped memory for tpu_custom_call.1']
    #allocation4 [shape = 's32[2]{0}', space=sflag, size = 0x8, scoped, tag = 'scoped memory for tpu_custom_call.1']
    #allocation5 [shape = 'u8[8192]{0}', space=vmem, size = 0x2000, scoped, tag = 'input window, operand 1']
    #allocation6 [shape = 's32[2]{0}', space=sflag, size = 0x8, scoped, tag = 'scoped memory for tpu_custom_call.1']
    #allocation7 [shape = 'u8[24576]{0}', space=vmem, size = 0x6000, scoped, tag = 'output window, operand 0']
    %7 = vsyncpa [#allocation3], 0
    %s8 = scalar_lea.sflag [#allocation3], 1
    %9 = vsyncpa %s8, 0
    %10 = vsyncpa [#allocation6], 0
    %s11 = scalar_lea.sflag [#allocation6], 1
    %12 = vsyncpa %s11, 0
    %13 = vsyncpa [#allocation4], 0
    %s14 = scalar_lea.sflag [#allocation4], 1
    %15 = vsyncpa %s14, 0
    loop: start=0, step=1, limit=4
    $region2: #{tpu_custom_call.1} parent=1 // loop_pre_header
      _
    $region3: #{tpu_custom_call.1} parent=1 // loop_header
      %s17 = sphi 0, %s21
      %p18 = scmp.ge.s32.totalorder %s17, 4
      %s24 = sphi 0, %s36
      %s25 = sphi 0, %s32
      %s26 = sphi 0, %s24
      %s27 = sphi 0, %s25
      %s28 = sphi 0, %s26
      %s29 = sphi 0, %s27
      %s41 = sphi 0, %s43
      %s44 = sphi 0, %s41
      %s45 = sphi 0, %s44
      %s61 = sphi 0, %s45
      %s69 = sphi 0, %s71
      %s72 = sphi 0, %s69
      %s73 = sphi 0, %s72
      %s89 = sphi 0, %s73
      %s97 = sphi 0, %s99
      %s100 = sphi 0, %s97
      %s101 = sphi 0, %s100
      %s117 = sphi 0, %s101
    $region4: #{tpu_custom_call.1} parent=1 // loop_header_branch
      %20 = sbr.rel (%p18) target = $region8
    $region5: #{tpu_custom_call.1} parent=1 // loop_body
      %s22 = ssub.s32 %s17, 1
      %s23 = ssub.s32 %s17, 2
      %s30 = sadd.s32 1, %s25
      %p31 = scmp.ge.s32.totalorder %s30, 1
      %s32 = scalar_select %p31, 0, %s30
      %s33 = sadd.s32 1, %s24
      %s34 = scalar_select %p31, %s33, %s24
      %p35 = scmp.ge.s32.totalorder %s34, 2
      %s36 = scalar_select %p35, 0, %s34
      %s37 = ssub.s32 %s24, %s36
      %s38 = ssub.s32 %s25, %s32
      %s39 = sor.u32 %s37, %s38
      %p40 = scmp.eq.s32.totalorder %s39, 0
      %s42 = sadd.s32 %s41, 1
      %s43 = scalar_select %p40, %s41, %s42
      %p46 = pneg %p40
      %p47 = scmp.eq.s32.totalorder %s17, 1
      %p48 = por %p46, %p47
      %p49 = scmp.ne.s32.totalorder %s41, %s44
      %p50 = scmp.eq.s32.totalorder %s17, 0
      %p51 = por %p49, %p50
      %p52 = scmp.ne.s32.totalorder %s41, %s44
      %p53 = scmp.eq.s32.totalorder %s22, 1
      %p54 = por %p52, %p53
      %p55 = scmp.ne.s32.totalorder %s44, %s45
      %p56 = scmp.eq.s32.totalorder %s22, 0
      %p57 = por %p55, %p56
      %p58 = scmp.ne.s32.totalorder %s44, %s45
      %p59 = scmp.eq.s32.totalorder %s23, 1
      %p60 = por %p58, %p59
      %p62 = scmp.ne.s32.totalorder %s45, %s61
      %p63 = scmp.eq.s32.totalorder %s23, 0
      %p64 = por %p62, %p63
      %s65 = ssub.s32 %s24, %s36
      %s66 = ssub.s32 %s25, %s32
      %s67 = sor.u32 %s65, %s66
      %p68 = scmp.eq.s32.totalorder %s67, 0
      %s70 = sadd.s32 %s69, 1
      %s71 = scalar_select %p68, %s69, %s70
      %p74 = pneg %p68
      %p75 = scmp.eq.s32.totalorder %s17, 1
      %p76 = por %p74, %p75
      %p77 = scmp.ne.s32.totalorder %s69, %s72
      %p78 = scmp.eq.s32.totalorder %s17, 0
      %p79 = por %p77, %p78
      %p80 = scmp.ne.s32.totalorder %s69, %s72
      %p81 = scmp.eq.s32.totalorder %s22, 1
      %p82 = por %p80, %p81
      %p83 = scmp.ne.s32.totalorder %s72, %s73
      %p84 = scmp.eq.s32.totalorder %s22, 0
      %p85 = por %p83, %p84
      %p86 = scmp.ne.s32.totalorder %s72, %s73
      %p87 = scmp.eq.s32.totalorder %s23, 1
      %p88 = por %p86, %p87
      %p90 = scmp.ne.s32.totalorder %s73, %s89
      %p91 = scmp.eq.s32.totalorder %s23, 0
      %p92 = por %p90, %p91
      %s93 = ssub.s32 %s24, %s36
      %s94 = ssub.s32 %s25, %s32
      %s95 = sor.u32 %s93, %s94
      %p96 = scmp.eq.s32.totalorder %s95, 0
      %s98 = sadd.s32 %s97, 1
      %s99 = scalar_select %p96, %s97, %s98
      %p102 = pneg %p96
      %p103 = scmp.eq.s32.totalorder %s17, 1
      %p104 = por %p102, %p103
      %p105 = scmp.ne.s32.totalorder %s97, %s100
      %p106 = scmp.eq.s32.totalorder %s17, 0
      %p107 = por %p105, %p106
      %p108 = scmp.ne.s32.totalorder %s97, %s100
      %p109 = scmp.eq.s32.totalorder %s22, 1
      %p110 = por %p108, %p109
      %p111 = scmp.ne.s32.totalorder %s100, %s101
      %p112 = scmp.eq.s32.totalorder %s22, 0
      %p113 = por %p111, %p112
      %p114 = scmp.ne.s32.totalorder %s100, %s101
      %p115 = scmp.eq.s32.totalorder %s23, 1
      %p116 = por %p114, %p115
      %p118 = scmp.ne.s32.totalorder %s101, %s117
      %p119 = scmp.eq.s32.totalorder %s23, 0
      %p120 = por %p118, %p119
      %p121 = scmp.le.s32.totalorder 1, %s17
      %p122 = scmp.lt.s32.totalorder %s17, 3
      %p123 = pnand %p121, %p122
      %p124 = pneg %p123
      // Predicated region
      $region9: #{tpu_custom_call.1} parent=5 // pred_check
        _
      $region10: #{tpu_custom_call.1} parent=5 // pred_check_branch
        %126 = sbr.rel (%p123) target = $region12
      $region11: #{tpu_custom_call.1} parent=5 // pred_region
        %s127 = ssub.s32 %s17, 1
      $region12: #{tpu_custom_call.1} parent=5 // pred_fallthru
        _
      %p128 = scmp.lt.s32.totalorder %s17, 2
      // Predicated region
      $region13: #{tpu_custom_call.1} parent=5 // pred_check
        %p129 = pneg %p128
      $region14: #{tpu_custom_call.1} parent=5 // pred_check_branch
        %131 = sbr.rel (%p129) target = $region16
      $region15: #{tpu_custom_call.1} parent=5 // pred_region
        // Predicated region
        $region17: #{tpu_custom_call.1} parent=15 // pred_check
          %p132 = pneg %p51
        $region18: #{tpu_custom_call.1} parent=15 // pred_check_branch
          %134 = sbr.rel (%p132) target = $region20
        $region19: #{tpu_custom_call.1} parent=15 // pred_region
          %s135 = sand.u32 %s41, 1
          %s136 = scalar_lea.sflag [#allocation3], %s135
          %s137 = sand.u32 %s41, 1
          %s138 = smul.addr %s137, 128
          %s139 = scalar_lea.vmem [#allocation2], %s138
          %s140 = smul.u32 4, %s25
          %s142 = ssub.s32 2048, 2048
          %143 = vsyncadd %s136, %s142
          %s144 = smul.addr %s24, 16
          %s145 = sadd.s32 %s140, %s144
          %s146 = smul.addr %s145, 128
          %s147 = scalar_lea.hbm %s0, %s146
          %s148 = sshll.u32 %s139, 4
          %s149 = int_to_ptr.vmem [resolvable:$true] %s148
          %154 = dma.hbm_to_vmem [thread:$0]  %s147, 2048, %s149, %s136, 128, 128, 8
        $region20: #{tpu_custom_call.1} parent=15 // pred_fallthru
          _
        // Predicated region
        $region21: #{tpu_custom_call.1} parent=15 // pred_check
          %p155 = pneg %p79
        $region22: #{tpu_custom_call.1} parent=15 // pred_check_branch
          %157 = sbr.rel (%p155) target = $region24
        $region23: #{tpu_custom_call.1} parent=15 // pred_region
          %s158 = sand.u32 %s69, 1
          %s159 = scalar_lea.sflag [#allocation6], %s158
          %s160 = sand.u32 %s69, 1
          %s161 = smul.addr %s160, 8
          %s162 = scalar_lea.vmem [#allocation5], %s161
          %s164 = ssub.s32 128, 128
          %165 = vsyncadd %s159, %s164
          %s166 = sadd.s32 %s25, %s24
          %s167 = smul.addr %s166, 128
          %s168 = scalar_lea.hbm %s1, %s167
          %s170 = sshll.u32 %s162, 4
          %s171 = int_to_ptr.vmem [resolvable:$true] %s170
          %173 = dma.hbm_to_vmem [thread:$0]  %s168, 128, %s171, %s159
        $region24: #{tpu_custom_call.1} parent=15 // pred_fallthru
          _
      $region16: #{tpu_custom_call.1} parent=5 // pred_fallthru
        _
      %p174 = scmp.le.s32.totalorder 1, %s17
      %p175 = scmp.lt.s32.totalorder %s17, 3
      %p176 = pnand %p174, %p175
      %p177 = pneg %p176
      // Predicated region
      $region25: #{tpu_custom_call.1} parent=5 // pred_check
        _
      $region26: #{tpu_custom_call.1} parent=5 // pred_check_branch
        %179 = sbr.rel (%p176) target = $region28
      $region27: #{tpu_custom_call.1} parent=5 // pred_region
        %s180 = ssub.s32 %s17, 1
        %s181 = sand.u32 %s44, 1
        %s182 = scalar_lea.sflag [#allocation3], %s181
        %s183 = sand.u32 %s44, 1
        %s184 = smul.addr %s183, 128
        %s185 = scalar_lea.vmem [#allocation2], %s184
        // Predicated region
        $region29: #{tpu_custom_call.1} parent=27 // pred_check
          %p186 = pneg %p57
        $region30: #{tpu_custom_call.1} parent=27 // pred_check_branch
          %188 = sbr.rel (%p186) target = $region32
        $region31: #{tpu_custom_call.1} parent=27 // pred_region
          %189 = dma.done %s182, 2048
        $region32: #{tpu_custom_call.1} parent=27 // pred_fallthru
          _
        %s190 = sand.u32 %s72, 1
        %s191 = scalar_lea.sflag [#allocation6], %s190
        %s192 = sand.u32 %s72, 1
        %s193 = smul.addr %s192, 8
        %s194 = scalar_lea.vmem [#allocation5], %s193
        // Predicated region
        $region33: #{tpu_custom_call.1} parent=27 // pred_check
          %p195 = pneg %p85
        $region34: #{tpu_custom_call.1} parent=27 // pred_check_branch
          %197 = sbr.rel (%p195) target = $region36
        $region35: #{tpu_custom_call.1} parent=27 // pred_region
          %198 = dma.done %s191, 128
        $region36: #{tpu_custom_call.1} parent=27 // pred_fallthru
          _
        %s199 = sand.u32 %s44, 1
        %s200 = scalar_lea.sflag [#allocation3], %s199
        %s201 = sand.u32 %s44, 1
        %s202 = smul.addr %s201, 128
        %s203 = scalar_lea.vmem [#allocation2], %s202
        %p204 = pneg %p57
        %p205 = pneg %p54
        %s206 = sand.u32 %s72, 1
        %s207 = scalar_lea.sflag [#allocation6], %s206
        %s208 = sand.u32 %s72, 1
        %s209 = smul.addr %s208, 8
        %s210 = scalar_lea.vmem [#allocation5], %s209
        %p211 = pneg %p85
        %p212 = pneg %p82
        %p213 = pneg %p113
        %p214 = pneg %p110
        %s215 = sand.u32 %s100, 1
        %s216 = scalar_lea.sflag [#allocation4], %s215
        %s217 = sand.u32 %s100, 1
        %s218 = smul.addr %s217, 24
        %s219 = scalar_lea.vmem [#allocation7], %s218
        %s220 = smul.u32 4, %s27
        %v221 = vld [vmem:[%s194] sm:$0xff]
        %v222 = vunpack.c.0.s8 %v221
        %v223 = vunpack.c.1.s8 %v221
        %v224 = vunpack.c.2.s8 %v221
        %v225 = vunpack.c.3.s8 %v221
        %v226 = vld [vmem:[%s185] sm:$0xff]
        %v227 = vld [vmem:[%s185 + $0x8] sm:$0xff]
        %v228 = vld [vmem:[%s185 + $0x10] sm:$0xff]
        %v229 = vld [vmem:[%s185 + $0x18] sm:$0xff]
        %s230 = scalar_lea.vmem %s185, 32 [#allocation2]
        %v231 = vld [vmem:[%s230] sm:$0xff]
        %v232 = vld [vmem:[%s230 + $0x8] sm:$0xff]
        %v233 = vld [vmem:[%s230 + $0x10] sm:$0xff]
        %v234 = vld [vmem:[%s230 + $0x18] sm:$0xff]
        %v235 = vmax.f32 %v226, %v231
        %v236 = vmax.f32 %v227, %v232
        %v237 = vmax.f32 %v228, %v233
        %v238 = vmax.f32 %v229, %v234
        %s239 = scalar_lea.vmem %s185, 64 [#allocation2]
        %v240 = vld [vmem:[%s239] sm:$0xff]
        %v241 = vld [vmem:[%s239 + $0x8] sm:$0xff]
        %v242 = vld [vmem:[%s239 + $0x10] sm:$0xff]
        %v243 = vld [vmem:[%s239 + $0x18] sm:$0xff]
        %v244 = vmax.f32 %v235, %v240
        %v245 = vmax.f32 %v236, %v241
        %v246 = vmax.f32 %v237, %v242
        %v247 = vmax.f32 %v238, %v243
        %s248 = scalar_lea.vmem %s185, 96 [#allocation2]
        %v249 = vld [vmem:[%s248] sm:$0xff]
        %v250 = vld [vmem:[%s248 + $0x8] sm:$0xff]
        %v251 = vld [vmem:[%s248 + $0x10] sm:$0xff]
        %v252 = vld [vmem:[%s248 + $0x18] sm:$0xff]
        %v253 = vmax.f32 %v244, %v249
        %v254 = vmax.f32 %v245, %v250
        %v255 = vmax.f32 %v246, %v251
        %v256 = vmax.f32 %v247, %v252
        %v257 = vsub.f32 %v226, %v253
        %v258 = vsub.f32 %v227, %v254
        %v259 = vsub.f32 %v228, %v255
        %v260 = vsub.f32 %v229, %v256
        %v261 = vmul.f32 %v257, 1.442695
        %v262 = vpow.pop %v261
        %v263 = vmul.f32 %v258, 1.442695
        %v264 = vpow.pop %v263
        %v265 = vmul.f32 %v259, 1.442695
        %v266 = vpow.pop %v265
        %v267 = vmul.f32 %v260, 1.442695
        %v268 = vpow.pop %v267
        %v269 = vadd.f32 %v262, 0.0
        %v270 = vadd.f32 %v264, 0.0
        %v271 = vadd.f32 %v266, 0.0
        %v272 = vadd.f32 %v268, 0.0
        %vm273 = vcmp.eq.s32.totalorder %v222, 0
        %vm274 = vcmp.eq.s32.totalorder %v223, 0
        %vm275 = vcmp.eq.s32.totalorder %v224, 0
        %vm276 = vcmp.eq.s32.totalorder %v225, 0
        %v277 = vsel %vm273, %v226, 0.0
        %v278 = vsel %vm274, %v227, 0.0
        %v279 = vsel %vm275, %v228, 0.0
        %v280 = vsel %vm276, %v229, 0.0
        %v281 = vsub.f32 %v231, %v253
        %v282 = vsub.f32 %v232, %v254
        %v283 = vsub.f32 %v233, %v255
        %v284 = vsub.f32 %v234, %v256
        %v285 = vmul.f32 %v281, 1.442695
        %v286 = vpow.pop %v285
        %v287 = vmul.f32 %v282, 1.442695
        %v288 = vpow.pop %v287
        %v289 = vmul.f32 %v283, 1.442695
        %v290 = vpow.pop %v289
        %v291 = vmul.f32 %v284, 1.442695
        %v292 = vpow.pop %v291
        %v293 = vadd.f32 %v269, %v286
        %v294 = vadd.f32 %v270, %v288
        %v295 = vadd.f32 %v271, %v290
        %v296 = vadd.f32 %v272, %v292
        %vm297 = vcmp.eq.s32.totalorder %v222, 1
        %vm298 = vcmp.eq.s32.totalorder %v223, 1
        %vm299 = vcmp.eq.s32.totalorder %v224, 1
        %vm300 = vcmp.eq.s32.totalorder %v225, 1
        %v301 = vsel %vm297, %v231, %v277
        %v302 = vsel %vm298, %v232, %v278
        %v303 = vsel %vm299, %v233, %v279
        %v304 = vsel %vm300, %v234, %v280
        %v305 = vsub.f32 %v240, %v253
        %v306 = vsub.f32 %v241, %v254
        %v307 = vsub.f32 %v242, %v255
        %v308 = vsub.f32 %v243, %v256
        %v309 = vmul.f32 %v305, 1.442695
        %v310 = vpow.pop %v309
        %v311 = vmul.f32 %v306, 1.442695
        %v312 = vpow.pop %v311
        %v313 = vmul.f32 %v307, 1.442695
        %v314 = vpow.pop %v313
        %v315 = vmul.f32 %v308, 1.442695
        %v316 = vpow.pop %v315
        %v317 = vadd.f32 %v293, %v310
        %v318 = vadd.f32 %v294, %v312
        %v319 = vadd.f32 %v295, %v314
        %v320 = vadd.f32 %v296, %v316
        %vm321 = vcmp.eq.s32.totalorder %v222, 2
        %vm322 = vcmp.eq.s32.totalorder %v223, 2
        %vm323 = vcmp.eq.s32.totalorder %v224, 2
        %vm324 = vcmp.eq.s32.totalorder %v225, 2
        %v325 = vsel %vm321, %v240, %v301
        %v326 = vsel %vm322, %v241, %v302
        %v327 = vsel %vm323, %v242, %v303
        %v328 = vsel %vm324, %v243, %v304
        %v329 = vsub.f32 %v249, %v253
        %v330 = vsub.f32 %v250, %v254
        %v331 = vsub.f32 %v251, %v255
        %v332 = vsub.f32 %v252, %v256
        %v333 = vmul.f32 %v329, 1.442695
        %v334 = vpow.pop %v333
        %v335 = vmul.f32 %v330, 1.442695
        %v336 = vpow.pop %v335
        %v337 = vmul.f32 %v331, 1.442695
        %v338 = vpow.pop %v337
        %v339 = vmul.f32 %v332, 1.442695
        %v340 = vpow.pop %v339
        %v341 = vadd.f32 %v317, %v334
        %v342 = vadd.f32 %v318, %v336
        %v343 = vadd.f32 %v319, %v338
        %v344 = vadd.f32 %v320, %v340
        %vm345 = vcmp.eq.s32.totalorder %v222, 3
        %vm346 = vcmp.eq.s32.totalorder %v223, 3
        %vm347 = vcmp.eq.s32.totalorder %v224, 3
        %vm348 = vcmp.eq.s32.totalorder %v225, 3
        %v349 = vsel %vm345, %v249, %v325
        %v350 = vsel %vm346, %v250, %v326
        %v351 = vsel %vm347, %v251, %v327
        %v352 = vsel %vm348, %v252, %v328
        %v353 = vsub.f32 %v349, %v253
        %v354 = vsub.f32 %v350, %v254
        %v355 = vsub.f32 %v351, %v255
        %v356 = vsub.f32 %v352, %v256
        %v357 = vlog2.pop %v341
        %v358 = vmul.f32 %v357, 0.6931472
        %v359 = vlog2.pop %v342
        %v360 = vmul.f32 %v359, 0.6931472
        %v361 = vlog2.pop %v343
        %v362 = vmul.f32 %v361, 0.6931472
        %v363 = vlog2.pop %v344
        %v364 = vmul.f32 %v363, 0.6931472
        %v365 = vsub.f32 %v353, %v358
        %v366 = vsub.f32 %v354, %v360
        %v367 = vsub.f32 %v355, %v362
        %v368 = vsub.f32 %v356, %v364
        %v369 = vsub.f32 0.0, %v365
        %v370 = vsub.f32 0.0, %v366
        %v371 = vsub.f32 0.0, %v367
        %v372 = vsub.f32 0.0, %v368
        %vm373 = vcmp.ne.s32.totalorder %v222, 2
        %vm374 = vcmp.ne.s32.totalorder %v223, 2
        %vm375 = vcmp.ne.s32.totalorder %v224, 2
        %vm376 = vcmp.ne.s32.totalorder %v225, 2
        %v377 = vsel %vm373, %v369, 0.0
        %v378 = vsel %vm374, %v370, 0.0
        %v379 = vsel %vm375, %v371, 0.0
        %v380 = vsel %vm376, %v372, 0.0
        %v381 = vadd.f32 %v377, %v378
        %v382 = vadd.f32 %v381, %v379
        %v383 = vadd.f32 %v382, %v380
        %384 = vst [vmem:[%s219] sm:$0xff] %v383
        %v385 = vsel %vm273, %v377, 0.0
        %v386 = vsel %vm274, %v378, 0.0
        %v387 = vsel %vm275, %v379, 0.0
        %v388 = vsel %vm276, %v380, 0.0
        %v389 = vadd.f32 %v385, %v386
        %v390 = vadd.f32 %v389, %v387
        %v391 = vadd.f32 %v390, %v388
        %s392 = scalar_lea.vmem %s219, 8 [#allocation7]
        %393 = vst [vmem:[%s392] sm:$0xff] %v391
        %v394 = vsel %vm373, 1, 0
        %v395 = vsel %vm374, 1, 0
        %v396 = vsel %vm375, 1, 0
        %v397 = vsel %vm376, 1, 0
        %v398 = vcvt.s32.f32 %v394
        %v399 = vcvt.s32.f32 %v395
        %v400 = vcvt.s32.f32 %v396
        %v401 = vcvt.s32.f32 %v397
        %v402 = vadd.f32 %v398, %v399
        %v403 = vadd.f32 %v402, %v400
        %v404 = vadd.f32 %v403, %v401
        %s405 = scalar_lea.vmem %s219, 16 [#allocation7]
        %406 = vst [vmem:[%s405] sm:$0xff] %v404
        %s407 = sand.u32 %s100, 1
        %s408 = scalar_lea.sflag [#allocation4], %s407
        %s409 = sand.u32 %s100, 1
        %s410 = smul.addr %s409, 24
        %s411 = scalar_lea.vmem [#allocation7], %s410
        // Predicated region
        $region37: #{tpu_custom_call.1} parent=27 // pred_check
          %p412 = pneg %p110
        $region38: #{tpu_custom_call.1} parent=27 // pred_check_branch
          %414 = sbr.rel (%p412) target = $region40
        $region39: #{tpu_custom_call.1} parent=27 // pred_region
          %s416 = ssub.s32 384, 384
          %417 = vsyncadd %s408, %s416
          %s418 = smul.addr %s27, 3
          %s419 = smul.addr %s26, 3
          %s420 = sadd.s32 %s418, %s419
          %s421 = smul.addr %s420, 128
          %s422 = scalar_lea.hbm %s2, %s421
          %s423 = sshll.u32 %s411, 4
          %s424 = int_to_ptr.vmem [resolvable:$true] %s423
          %429 = dma.vmem_to_hbm [thread:$0]  %s424, 384, %s422, %s408, 128, 128, 8
        $region40: #{tpu_custom_call.1} parent=27 // pred_fallthru
          _
      $region28: #{tpu_custom_call.1} parent=5 // pred_fallthru
        _
      %p430 = scmp.le.s32.totalorder 2, %s17
      // Predicated region
      $region41: #{tpu_custom_call.1} parent=5 // pred_check
        %p431 = pneg %p430
      $region42: #{tpu_custom_call.1} parent=5 // pred_check_branch
        %433 = sbr.rel (%p431) target = $region44
      $region43: #{tpu_custom_call.1} parent=5 // pred_region
        %s434 = ssub.s32 %s17, 2
        // Predicated region
        $region45: #{tpu_custom_call.1} parent=43 // pred_check
          %p435 = pneg %p116
        $region46: #{tpu_custom_call.1} parent=43 // pred_check_branch
          %437 = sbr.rel (%p435) target = $region48
        $region47: #{tpu_custom_call.1} parent=43 // pred_region
          %s438 = sand.u32 %s101, 1
          %s439 = scalar_lea.sflag [#allocation4], %s438
          %s440 = sand.u32 %s101, 1
          %s441 = smul.addr %s440, 24
          %s442 = scalar_lea.vmem [#allocation7], %s441
          %443 = dma.done %s439, 384
        $region48: #{tpu_custom_call.1} parent=43 // pred_fallthru
          _
      $region44: #{tpu_custom_call.1} parent=5 // pred_fallthru
        _
    $region6: #{tpu_custom_call.1} parent=1 // loop_footer
      %s21 = sadd.s32 1, %s17
    $region7: #{tpu_custom_call.1} parent=1 // loop_footer_branch
      %16 = sbr.rel target = $region3
    $region8: #{tpu_custom_call.1} parent=1 // loop_exit
      _
    %444 = vsyncpa [#allocation3], 1
    %s445 = scalar_lea.sflag [#allocation3], 1
    %446 = vsyncpa %s445, 1
    %447 = vsyncpa [#allocation6], 1
    %s448 = scalar_lea.sflag [#allocation6], 1
    %449 = vsyncpa %s448, 1
    %450 = vsyncpa [#allocation4], 1
    %s451 = scalar_lea.sflag [#allocation4], 1
    %452 = vsyncpa %s451, 1

</llo_original>
